<compile_context>
chip_gen: v5e
topology: v5e:2x2
jax: 0.10.0
libtpu: 0.0.40
codegen_flags: <defaults>
</compile_context>

<pallas_src>
import jax
import jax.numpy as jnp
from jax import lax
from jax.experimental import pallas as pl
from jax.experimental.pallas import tpu as pltpu

_LANE = 128
_SUBLANE = 8


def _round_up(x, m):
    return ((x + m - 1) // m) * m


# ----------------------------- kernel ----------------------------------------


def _make_critic_kernel(obs_dim, act_dim, h1_dim, h2_dim, n_q, o_w2, o_vec,
                        compute_dtype):
    """Builds the fused MLP kernel for static dims (closure = static constants)."""
    in_dim = obs_dim + act_dim
    n_tail = 2 + 2 * n_q  # rows: b1, b2, b3 (n_q rows, col 0), w3^T (n_q rows)

    def _network(x, c_ref, o_ref):
        # x: (TB, in_dim) in compute_dtype.  Weights/biases are sliced out of the
        # single packed consts block (resident in VMEM across grid steps).
        w1 = c_ref[0:in_dim, 0:h1_dim].astype(compute_dtype)
        w2 = c_ref[o_w2:o_w2 + h1_dim, 0:h2_dim].astype(compute_dtype)
        tail = c_ref[o_vec:o_vec + n_tail, :]                  # (n_tail, C) f32
        b1 = tail[0:1, 0:h1_dim]                               # (1, H1)
        b2 = tail[1:2, 0:h2_dim]                               # (1, H2)
        b3 = tail[2:2 + n_q, 0:1]                              # (n_q, 1)
        w3t = tail[2 + n_q:2 + 2 * n_q, 0:h2_dim].astype(compute_dtype)  # (n_q, H2)

        z1 = jnp.dot(x, w1, preferred_element_type=jnp.float32) + b1
        h1 = jnp.tanh(z1).astype(compute_dtype)
        z2 = jnp.dot(h1, w2, preferred_element_type=jnp.float32) + b2
        h2 = jnp.tanh(z2).astype(compute_dtype)
        # Final layer as a lane-dense row block: (n_q, H2) contracted against h2's
        # feature axis -> (n_q, TB).  Full-lane stores instead of (TB, 1) columns.
        q = lax.dot_general(w3t, h2, (((1,), (1,)), ((), ())),
                            preferred_element_type=jnp.float32)
        o_ref[...] = (q + b3).astype(o_ref.dtype)

    if act_dim > 0:
        def kernel(s_ref, a_ref, c_ref, o_ref, x_scr):
            # Fused concat: one layer-1 matmul over [state | action] without any
            # HBM-side concatenation (lane-shifted stores into a VMEM scratch).
            x_scr[:, 0:obs_dim] = s_ref[...]
            x_scr[:, obs_dim:in_dim] = a_ref[...]
            _network(x_scr[...].astype(compute_dtype), c_ref, o_ref)
    else:
        def kernel(s_ref, c_ref, o_ref):
            _network(s_ref[...].astype(compute_dtype), c_ref, o_ref)

    return kernel


# ----------------------------- packing ---------------------------------------


def _pack_params(w1, b1, w2, b2, w3, b3):
    """Pack all constant operands into one f32 array (single DMA / VMEM buffer).

    Layout (rows):
      [0, in_dim)              : w1
      [o_w2, o_w2 + H1)        : w2
      o_vec + 0                : b1
      o_vec + 1                : b2
      o_vec + 2 .. +1+n_q      : b3   (column 0)
      o_vec + 2+n_q .. end     : w3^T (n_q rows)
    """
    in_dim, h1_dim = w1.shape
    h1b, h2_dim = w2.shape
    assert h1b == h1_dim, (w1.shape, w2.shape)
    assert w3.ndim == 2 and w3.shape[0] == h2_dim, w3.shape  # explicit (H2, n_q) check
    n_q = w3.shape[1]
    assert b1.shape == (h1_dim,), b1.shape
    assert b2.shape == (h2_dim,), b2.shape
    assert b3.shape == (n_q,), b3.shape

    cols = max(h1_dim, h2_dim)
    o_w2 = _round_up(in_dim, _SUBLANE)
    o_vec = o_w2 + _round_up(h1_dim, _SUBLANE)
    rows = o_vec + 2 + 2 * n_q

    c = jnp.zeros((rows, cols), jnp.float32)
    c = c.at[0:in_dim, 0:h1_dim].set(w1.astype(jnp.float32))
    c = c.at[o_w2:o_w2 + h1_dim, 0:h2_dim].set(w2.astype(jnp.float32))
    c = c.at[o_vec, 0:h1_dim].set(b1.astype(jnp.float32))
    c = c.at[o_vec + 1, 0:h2_dim].set(b2.astype(jnp.float32))
    c = c.at[o_vec + 2:o_vec + 2 + n_q, 0].set(b3.astype(jnp.float32))
    c = c.at[o_vec + 2 + n_q:o_vec + 2 + 2 * n_q, 0:h2_dim].set(
        w3.astype(jnp.float32).T)

    dims = (in_dim, h1_dim, h2_dim, n_q, o_w2, o_vec)
    return c, dims


# ----------------------------- pallas driver ----------------------------------


def _critic_pallas(state, action, consts, dims, *, batch_tile, compute_dtype):
    in_dim, h1_dim, h2_dim, n_q, o_w2, o_vec = dims
    B, obs_dim = state.shape
    act_dim = 0 if action is None else action.shape[1]
    assert obs_dim + act_dim == in_dim, (obs_dim, act_dim, in_dim)

    # ---- batch tiling --------------------------------------------------------
    # Output rows are (n_q, B_pad) with B_pad a 128 multiple -> lane-dense stores.
    # Inputs are read with (TB, feat) blocks; the last (or only) block may extend
    # past B — Pallas clamps the copy and the extra rows hold garbage that only
    # feeds garbage output *columns*, sliced off below.  No jnp.pad -> no extra
    # HBM round trip of the batch.
    B_pad = _round_up(B, _LANE)
    cap = max(_LANE, (batch_tile // _LANE) * _LANE)
    num_tiles = pl.cdiv(B_pad, cap)
    if num_tiles == 1 and B_pad >= 2 * _LANE:
        num_tiles = 2  # >= 2 parallel tiles so both v7x TensorCores get work
    TB = _round_up(pl.cdiv(B_pad, num_tiles), _LANE)
    B_pad = num_tiles * TB

    kernel = _make_critic_kernel(obs_dim, act_dim, h1_dim, h2_dim, n_q,
                                 o_w2, o_vec, compute_dtype)

    rows, cols = consts.shape
    const_spec = pl.BlockSpec((rows, cols), lambda i: (0, 0))  # resident in VMEM

    if action is not None:
        in_specs = [
            pl.BlockSpec((TB, obs_dim), lambda i: (i, 0)),     # state tile
            pl.BlockSpec((TB, act_dim), lambda i: (i, 0)),     # action tile
            const_spec,                                        # packed weights/biases
        ]
        args = (state, action, consts)
        scratch_shapes = [pltpu.VMEM((TB, in_dim), jnp.float32)]  # concat buffer
    else:
        in_specs = [pl.BlockSpec((TB, obs_dim), lambda i: (i, 0)), const_spec]
        args = (state, consts)
        scratch_shapes = []

    out = pl.pallas_call(
        kernel,
        out_shape=jax.ShapeDtypeStruct((n_q, B_pad), jnp.float32),
        grid=(num_tiles,),
        in_specs=in_specs,
        out_specs=pl.BlockSpec((n_q, TB), lambda i: (0, i)),   # lane-dense output rows
        scratch_shapes=scratch_shapes,
        compiler_params=pltpu.CompilerParams(
            dimension_semantics=("parallel",)),
    )(*args)

    return out[:, :B]  # drop padded/garbage columns


# ----------------------------- public API -------------------------------------


def critic_forward(state, action, params, *, batch_tile=2048,
                   compute_dtype=jnp.bfloat16):
    """Pallas implementation of Critic.forward(state, action) -> (B,)."""
    w1, b1, w2, b2, w3, b3 = params
    consts, dims = _pack_params(w1, b1, w2, b2, w3, b3)
    assert dims[3] == 1, "critic_forward expects a single output head"
    out = _critic_pallas(state, action, consts, dims,
                         batch_tile=batch_tile, compute_dtype=compute_dtype)
    return out[0]  # (1, B) row -> (B,)  == value.squeeze(-1)


def critic_twin_forward(state, action, params_q1, params_q2, *, batch_tile=2048,
                        compute_dtype=jnp.bfloat16):
    """SAC twin critic: both Q heads from ONE pallas_call.

    The two critics' weights are stacked along the feature axis (hidden layers
    become block-diagonal), doubling MXU lane utilization for ~the same number of
    MXU passes and halving kernel launches.
    """
    w1a, b1a, w2a, b2a, w3a, b3a = params_q1
    w1b, b1b, w2b, b2b, w3b, b3b = params_q2
    assert w1a.shape == w1b.shape and w2a.shape == w2b.shape and w3a.shape == w3b.shape
    h1_dim, h2_dim = w2a.shape
    zero = jnp.zeros((h1_dim, h2_dim), jnp.float32)
    zcol = jnp.zeros((h2_dim, 1), jnp.float32)

    w1 = jnp.concatenate([w1a, w1b], axis=1)                       # (in, 2*H1)
    b1 = jnp.concatenate([b1a, b1b], axis=0)
    w2 = jnp.concatenate(
        [jnp.concatenate([w2a, zero], axis=1),
         jnp.concatenate([zero, w2b], axis=1)], axis=0)            # (2H1, 2H2) block-diag
    b2 = jnp.concatenate([b2a, b2b], axis=0)
    w3 = jnp.concatenate(
        [jnp.concatenate([w3a, zcol], axis=1),
         jnp.concatenate([zcol, w3b], axis=1)], axis=0)            # (2H2, 2) block-diag
    b3 = jnp.concatenate([b3a, b3b], axis=0)                       # (2,)

    consts, dims = _pack_params(w1, b1, w2, b2, w3, b3)
    out = _critic_pallas(state, action, consts, dims,
                         batch_tile=batch_tile, compute_dtype=compute_dtype)
    return out[0], out[1]


# ----------------------------- reference / init -------------------------------


def init_critic_params(key, in_dim, hidden=(32, 32)):
    """Deterministic init mimicking torch.nn.Linear default (uniform +-1/sqrt(fan_in))."""
    sizes = [in_dim] + list(hidden) + [1]
    params = []
    for j in range(len(sizes) - 1):
        key, kw, kb = jax.random.split(key, 3)
        fan_in = sizes[j]
        bound = 1.0 / jnp.sqrt(fan_in)
        w = jax.random.uniform(kw, (sizes[j], sizes[j + 1]), jnp.float32, -bound, bound)
        b = jax.random.uniform(kb, (sizes[j + 1],), jnp.float32, -bound, bound)
        params += [w, b]
    return tuple(params)


def critic_forward_ref(state, action, params):
    """Plain-JAX f32 reference for correctness checking."""
    w1, b1, w2, b2, w3, b3 = params
    x = jnp.concatenate([state, action], axis=-1) if action is not None else state
    h1 = jnp.tanh(x @ w1 + b1)
    h2 = jnp.tanh(h1 @ w2 + b2)
    return (h2 @ w3 + b3)[:, 0]


# ----------------------------- tests ------------------------------------------

if __name__ == "__main__":
    # Shapes consistent with Critic(observation_dim=24, action_dim=8, hidden=(32, 32)).
    B, obs_dim, act_dim = 16, 24, 8
    hidden = (32, 32)

    key = jax.random.PRNGKey(0)
    k_state, k_action, k_params, k_params2 = jax.random.split(key, 4)
    state = jax.random.normal(k_state, (B, obs_dim), jnp.float32)
    action = jax.random.normal(k_action, (B, act_dim), jnp.float32)

    params_q = init_critic_params(k_params, obs_dim + act_dim, hidden)
    params_q2 = init_critic_params(k_params2, obs_dim + act_dim, hidden)
    params_v = init_critic_params(k_params, obs_dim, hidden)

    # 1) Exact-semantics check: f32 MXU passes, tight tolerance.
    ref = critic_forward_ref(state, action, params_q)
    val_f32 = jax.block_until_ready(
        critic_forward(state, action, params_q, compute_dtype=jnp.float32))
    assert val_f32.shape == (B,), val_f32.shape
    assert jnp.allclose(val_f32, ref, atol=1e-5, rtol=1e-5), (val_f32, ref)

    # 2) Default path: single-pass bf16 MXU, f32 accumulation (looser tolerance,
    #    expected precision change per review).
    val_bf16 = jax.block_until_ready(critic_forward(state, action, params_q))
    assert val_bf16.shape == (B,), val_bf16.shape
    assert jnp.allclose(val_bf16, ref, atol=5e-2, rtol=5e-2), (val_bf16, ref)

    # 3) V(s) path (action=None), same module semantics.
    ref_v = critic_forward_ref(state, None, params_v)
    val_v = jax.block_until_ready(critic_forward(state, None, params_v))
    assert val_v.shape == (B,), val_v.shape
    assert jnp.allclose(val_v, ref_v, atol=5e-2, rtol=5e-2), (val_v, ref_v)

    # 4) Multi-tile path with a partial final tile and NO wrapper-side padding.
    B_big = 272  # 3 tiles of 128 with batch_tile=128; last tile partially out of range
    ks, ka = jax.random.split(jax.random.PRNGKey(1))
    state_big = jax.random.normal(ks, (B_big, obs_dim), jnp.float32)
    action_big = jax.random.normal(ka, (B_big, act_dim), jnp.float32)
    ref_big = critic_forward_ref(state_big, action_big, params_q)
    val_big = jax.block_until_ready(
        critic_forward(state_big, action_big, params_q, batch_tile=128))
    assert val_big.shape == (B_big,), val_big.shape
    assert jnp.allclose(val_big, ref_big, atol=5e-2, rtol=5e-2)

    # 5) Twin critic: both Q heads from a single pallas_call (2 parallel tiles).
    q1, q2 = critic_twin_forward(state_big, action_big, params_q, params_q2)
    jax.block_until_ready((q1, q2))
    ref_q1 = critic_forward_ref(state_big, action_big, params_q)
    ref_q2 = critic_forward_ref(state_big, action_big, params_q2)
    assert q1.shape == (B_big,) and q2.shape == (B_big,)
    assert jnp.allclose(q1, ref_q1, atol=5e-2, rtol=5e-2)
    assert jnp.allclose(q2, ref_q2, atol=5e-2, rtol=5e-2)

    print("KERNEL_OK")
</pallas_src>

<mosaic_0001>
module attributes {stable_mosaic.version = 11 : i64} {
  func.func @kernel(%arg0: i32, %arg1: memref<128x24xf32, #tpu.memory_space<vmem>>, %arg2: memref<128x8xf32, #tpu.memory_space<vmem>>, %arg3: memref<68x32xf32, #tpu.memory_space<vmem>>, %arg4: memref<1x128xf32, #tpu.memory_space<vmem>>, %arg5: memref<128x32xf32, #tpu.memory_space<vmem>>) attributes {dimension_semantics = [#tpu.dimension_semantics<parallel>], iteration_bounds = array<i64: 1>, scalar_prefetch = 0 : i64, scratch_operands = 1 : i64, tpu.core_type = #tpu.core_type<tc>, window_params = [{transform_indices = @transform_0, window_bounds = array<i64: 128, 24>}, {transform_indices = @transform_1, window_bounds = array<i64: 128, 8>}, {pipeline_mode = #tpu.pipeline_mode<synchronous>, transform_indices = @transform_2, window_bounds = array<i64: 68, 32>}, {transform_indices = @transform_3, window_bounds = array<i64: 1, 128>}]} {
    %c0 = arith.constant 0 : index
    %c0_0 = arith.constant 0 : index
    %0 = vector.load %arg1[%c0, %c0_0] : memref<128x24xf32, #tpu.memory_space<vmem>>, vector<128x24xf32>
    %c0_1 = arith.constant 0 : index
    %c0_2 = arith.constant 0 : index
    %1 = vector.load %arg5[%c0_1, %c0_2] : memref<128x32xf32, #tpu.memory_space<vmem>>, vector<128x24xf32>
    tpu.vector_store %arg5[%c0_1, %c0_2], %0 {strides = array<i32>} : memref<128x32xf32, #tpu.memory_space<vmem>>, vector<128x24xf32>,
    %c0_3 = arith.constant 0 : index
    %c0_4 = arith.constant 0 : index
    %2 = vector.load %arg2[%c0_3, %c0_4] : memref<128x8xf32, #tpu.memory_space<vmem>>, vector<128x8xf32>
    %c0_5 = arith.constant 0 : index
    %c24 = arith.constant 24 : index
    %3 = vector.load %arg5[%c0_5, %c24] : memref<128x32xf32, #tpu.memory_space<vmem>>, vector<128x8xf32>
    tpu.vector_store %arg5[%c0_5, %c24], %2 {strides = array<i32>} : memref<128x32xf32, #tpu.memory_space<vmem>>, vector<128x8xf32>,
    %c0_6 = arith.constant 0 : index
    %c0_7 = arith.constant 0 : index
    %4 = vector.load %arg5[%c0_6, %c0_7] : memref<128x32xf32, #tpu.memory_space<vmem>>, vector<128x32xf32>
    %c0_8 = arith.constant 0 : index
    %c0_9 = arith.constant 0 : index
    %5 = vector.load %arg3[%c0_8, %c0_9] : memref<68x32xf32, #tpu.memory_space<vmem>>, vector<32x32xf32>
    %c32 = arith.constant 32 : index
    %c0_10 = arith.constant 0 : index
    %6 = vector.load %arg3[%c32, %c0_10] : memref<68x32xf32, #tpu.memory_space<vmem>>, vector<32x32xf32>
    %c64 = arith.constant 64 : index
    %c0_11 = arith.constant 0 : index
    %7 = vector.load %arg3[%c64, %c0_11] : memref<68x32xf32, #tpu.memory_space<vmem>>, vector<4x32xf32>
    %8 = vector.extract_strided_slice %7 {offsets = [0, 0], sizes = [1, 32], strides = [1, 1]} : vector<4x32xf32> to vector<1x32xf32>
    %9 = vector.extract_strided_slice %7 {offsets = [1, 0], sizes = [1, 32], strides = [1, 1]} : vector<4x32xf32> to vector<1x32xf32>
    %10 = vector.extract_strided_slice %7 {offsets = [2, 0], sizes = [1, 1], strides = [1, 1]} : vector<4x32xf32> to vector<1x1xf32>
    %11 = vector.extract_strided_slice %7 {offsets = [3, 0], sizes = [1, 32], strides = [1, 1]} : vector<4x32xf32> to vector<1x32xf32>
    %cst = arith.constant dense<0.000000e+00> : vector<128x32xf32>
    %12 = tpu.matmul %4, %5, %cst {dimension_numbers = #tpu.dot_dimension_numbers<[1], [0], [0], [1], [0, 0, 1, 1], [], []>} : vector<128x32xf32>, vector<32x32xf32>, vector<128x32xf32> -> vector<128x32xf32>
    %13 = vector.broadcast %8 : vector<1x32xf32> to vector<128x32xf32>
    %14 = arith.addf %12, %13 : vector<128x32xf32>
    %15 = math.tanh %14 : vector<128x32xf32>
    %cst_12 = arith.constant dense<0.000000e+00> : vector<128x32xf32>
    %16 = tpu.matmul %15, %6, %cst_12 {dimension_numbers = #tpu.dot_dimension_numbers<[1], [0], [0], [1], [0, 0, 1, 1], [], []>} : vector<128x32xf32>, vector<32x32xf32>, vector<128x32xf32> -> vector<128x32xf32>
    %17 = vector.broadcast %9 : vector<1x32xf32> to vector<128x32xf32>
    %18 = arith.addf %16, %17 : vector<128x32xf32>
    %19 = math.tanh %18 : vector<128x32xf32>
    %cst_13 = arith.constant dense<0.000000e+00> : vector<1x128xf32>
    %20 = tpu.matmul %11, %19, %cst_13 {dimension_numbers = #tpu.dot_dimension_numbers<[1], [1], [0], [0], [0, 0, 1, 0], [], []>} : vector<1x32xf32>, vector<128x32xf32>, vector<1x128xf32> -> vector<1x128xf32>
    %21 = vector.broadcast %10 : vector<1x1xf32> to vector<1x128xf32>
    %22 = arith.addf %20, %21 : vector<1x128xf32>
    %c0_14 = arith.constant 0 : index
    %c0_15 = arith.constant 0 : index
    %23 = vector.load %arg4[%c0_14, %c0_15] : memref<1x128xf32, #tpu.memory_space<vmem>>, vector<1x128xf32>
    tpu.vector_store %arg4[%c0_14, %c0_15], %22 {strides = array<i32>} : memref<1x128xf32, #tpu.memory_space<vmem>>, vector<1x128xf32>,
    return
  }
  func.func @transform_0(%arg0: i32) -> (i32, i32) {
    %c0_i32 = arith.constant 0 : i32
    %c0_i32_0 = arith.constant 0 : i32
    return %arg0, %c0_i32 : i32, i32
  }
  func.func @transform_1(%arg0: i32) -> (i32, i32) {
    %c0_i32 = arith.constant 0 : i32
    %c0_i32_0 = arith.constant 0 : i32
    return %arg0, %c0_i32 : i32, i32
  }
  func.func @transform_2(%arg0: i32) -> (i32, i32) {
    %c0_i32 = arith.constant 0 : i32
    %c0_i32_0 = arith.constant 0 : i32
    %c0_i32_1 = arith.constant 0 : i32
    return %c0_i32, %c0_i32_0 : i32, i32
  }
  func.func @transform_3(%arg0: i32) -> (i32, i32) {
    %c0_i32 = arith.constant 0 : i32
    %c0_i32_0 = arith.constant 0 : i32
    return %c0_i32, %arg0 : i32, i32
  }
}

</mosaic_0001>

<llo_original>
// kernel: tpu_custom_call.1
$region0: #{tpu_custom_call.1}
  #allocation0 [shape = 'u32[]', space=smem, size = 0x4, offset = 0x4, fixed_abs, tag = 'smem constant byte address 0x4 - core index']
  #allocation1 [shape = 'u32[72,128]{1,0:T(1,128)}', space=vmem, size = 0x9000, scoped, tag = 'internal scratch']
  #allocation2 [shape = 'f32[128,32]{1,0:T(8,128)}', space=vmem, size = 0x10000, scoped, tag = 'scratch operand']
  %s0 = inlined_call_operand.vmem [shape: f32[16,24], index: 0, kind: input, shape index: {}]
  %s1 = inlined_call_operand.vmem [shape: f32[16,8], index: 1, kind: input, shape index: {}]
  %s2 = inlined_call_operand.vmem [shape: f32[68,32], index: 2, kind: input, shape index: {}]
  %s3 = inlined_call_operand.hbm [shape: f32[1,128], index: 3, kind: output, shape index: {}]
  %s4 = sld [smem:[#allocation0]]
  $region22: #{tpu_custom_call.1} parent=0
    _
  %s6 = ssub.s32 1, %s4
  %s7 = scalar_select 0, %s6, %s4
  $region1: #{tpu_custom_call.1} parent=0
    #allocation3 [shape = 'u8[512]{0}', space=vmem, size = 0x400, scoped, tag = 'output window, operand 0, single buffered']
    #allocation4 [shape = 's32[1]{0}', space=sflag, size = 0x4, scoped, tag = 'scoped memory for tpu_custom_call.1']
    %8 = vsyncpa [#allocation4], 0
    // Predicated region
    $region2: #{tpu_custom_call.1} parent=1 // pred_check
      _
    $region3: #{tpu_custom_call.1} parent=1 // pred_check_branch
      %10 = sbr.rel (0) target = $region5
    $region4: #{tpu_custom_call.1} parent=1 // pred_region
      _
    $region5: #{tpu_custom_call.1} parent=1 // pred_fallthru
      _
    // Predicated region
    $region6: #{tpu_custom_call.1} parent=1 // pred_check
      _
    $region7: #{tpu_custom_call.1} parent=1 // pred_check_branch
      %12 = sbr.rel (0) target = $region9
    $region8: #{tpu_custom_call.1} parent=1 // pred_region
      _
    $region9: #{tpu_custom_call.1} parent=1 // pred_fallthru
      _
    // Predicated region
    $region10: #{tpu_custom_call.1} parent=1 // pred_check
      _
    $region11: #{tpu_custom_call.1} parent=1 // pred_check_branch
      %14 = sbr.rel (0) target = $region13
    $region12: #{tpu_custom_call.1} parent=1 // pred_region
      _
    $region13: #{tpu_custom_call.1} parent=1 // pred_fallthru
      _
    %v15 = vld [vmem:[%s0] sm:$0xff]
    %v16 = vld [vmem:[%s0 + $0x8] sm:$0xff]
    %v17 = vld [vmem:[%s0 + $0x10] sm:$0xff]
    %v18 = vld [vmem:[%s0 + $0x18] sm:$0xff]
    %v19 = vld [vmem:[%s0 + $0x20] sm:$0xff]
    %v20 = vld [vmem:[%s0 + $0x28] sm:$0xff]
    %v21 = vld [vmem:[%s0 + $0x30] sm:$0xff]
    %v22 = vld [vmem:[%s0 + $0x38] sm:$0xff]
    %v23 = vld [vmem:[%s0 + $0x40] sm:$0xff]
    %v24 = vld [vmem:[%s0 + $0x48] sm:$0xff]
    %v25 = vld [vmem:[%s0 + $0x50] sm:$0xff]
    %v26 = vld [vmem:[%s0 + $0x58] sm:$0xff]
    %v27 = vld [vmem:[%s0 + $0x60] sm:$0xff]
    %v28 = vld [vmem:[%s0 + $0x68] sm:$0xff]
    %v29 = vld [vmem:[%s0 + $0x70] sm:$0xff]
    %v30 = vld [vmem:[%s0 + $0x78] sm:$0xff]
    %vm31 = vcmask 195584
    %32 = vst.msk [vmem:[#allocation2] sm:$0xff] %vm31, %v15
    %33 = vst.msk [vmem:[#allocation2 + $0x8] sm:$0xff] %vm31, %v16
    %34 = vst.msk [vmem:[#allocation2 + $0x10] sm:$0xff] %vm31, %v17
    %35 = vst.msk [vmem:[#allocation2 + $0x18] sm:$0xff] %vm31, %v18
    %36 = vst.msk [vmem:[#allocation2 + $0x20] sm:$0xff] %vm31, %v19
    %37 = vst.msk [vmem:[#allocation2 + $0x28] sm:$0xff] %vm31, %v20
    %38 = vst.msk [vmem:[#allocation2 + $0x30] sm:$0xff] %vm31, %v21
    %39 = vst.msk [vmem:[#allocation2 + $0x38] sm:$0xff] %vm31, %v22
    %40 = vst.msk [vmem:[#allocation2 + $0x40] sm:$0xff] %vm31, %v23
    %41 = vst.msk [vmem:[#allocation2 + $0x48] sm:$0xff] %vm31, %v24
    %42 = vst.msk [vmem:[#allocation2 + $0x50] sm:$0xff] %vm31, %v25
    %43 = vst.msk [vmem:[#allocation2 + $0x58] sm:$0xff] %vm31, %v26
    %44 = vst.msk [vmem:[#allocation2 + $0x60] sm:$0xff] %vm31, %v27
    %45 = vst.msk [vmem:[#allocation2 + $0x68] sm:$0xff] %vm31, %v28
    %46 = vst.msk [vmem:[#allocation2 + $0x70] sm:$0xff] %vm31, %v29
    %47 = vst.msk [vmem:[#allocation2 + $0x78] sm:$0xff] %vm31, %v30
    %v48 = vld [vmem:[%s1] sm:$0xff]
    %v49 = vld [vmem:[%s1 + $0x8] sm:$0xff]
    %v50 = vld [vmem:[%s1 + $0x10] sm:$0xff]
    %v51 = vld [vmem:[%s1 + $0x18] sm:$0xff]
    %v52 = vld [vmem:[%s1 + $0x20] sm:$0xff]
    %v53 = vld [vmem:[%s1 + $0x28] sm:$0xff]
    %v54 = vld [vmem:[%s1 + $0x30] sm:$0xff]
    %v55 = vld [vmem:[%s1 + $0x38] sm:$0xff]
    %v56 = vld [vmem:[%s1 + $0x40] sm:$0xff]
    %v57 = vld [vmem:[%s1 + $0x48] sm:$0xff]
    %v58 = vld [vmem:[%s1 + $0x50] sm:$0xff]
    %v59 = vld [vmem:[%s1 + $0x58] sm:$0xff]
    %v60 = vld [vmem:[%s1 + $0x60] sm:$0xff]
    %v61 = vld [vmem:[%s1 + $0x68] sm:$0xff]
    %v62 = vld [vmem:[%s1 + $0x70] sm:$0xff]
    %v63 = vld [vmem:[%s1 + $0x78] sm:$0xff]
    %80 = vrot.lane.b32.xlu0 %v48, 24
    %v81 = vpop.permute.xlu0 %80
    %82 = vrot.lane.b32.xlu0 %v49, 24
    %v83 = vpop.permute.xlu0 %82
    %84 = vrot.lane.b32.xlu0 %v50, 24
    %v85 = vpop.permute.xlu0 %84
    %86 = vrot.lane.b32.xlu0 %v51, 24
    %v87 = vpop.permute.xlu0 %86
    %88 = vrot.lane.b32.xlu0 %v52, 24
    %v89 = vpop.permute.xlu0 %88
    %90 = vrot.lane.b32.xlu0 %v53, 24
    %v91 = vpop.permute.xlu0 %90
    %92 = vrot.lane.b32.xlu0 %v54, 24
    %v93 = vpop.permute.xlu0 %92
    %94 = vrot.lane.b32.xlu0 %v55, 24
    %v95 = vpop.permute.xlu0 %94
    %96 = vrot.lane.b32.xlu0 %v56, 24
    %v97 = vpop.permute.xlu0 %96
    %98 = vrot.lane.b32.xlu0 %v57, 24
    %v99 = vpop.permute.xlu0 %98
    %100 = vrot.lane.b32.xlu0 %v58, 24
    %v101 = vpop.permute.xlu0 %100
    %102 = vrot.lane.b32.xlu0 %v59, 24
    %v103 = vpop.permute.xlu0 %102
    %104 = vrot.lane.b32.xlu0 %v60, 24
    %v105 = vpop.permute.xlu0 %104
    %106 = vrot.lane.b32.xlu0 %v61, 24
    %v107 = vpop.permute.xlu0 %106
    %108 = vrot.lane.b32.xlu0 %v62, 24
    %v109 = vpop.permute.xlu0 %108
    %110 = vrot.lane.b32.xlu0 %v63, 24
    %v111 = vpop.permute.xlu0 %110
    %vm128 = vcmask 261312
    %129 = vst.msk [vmem:[#allocation2] sm:$0xff] %vm128, %v81
    %130 = vst.msk [vmem:[#allocation2 + $0x8] sm:$0xff] %vm128, %v83
    %131 = vst.msk [vmem:[#allocation2 + $0x10] sm:$0xff] %vm128, %v85
    %132 = vst.msk [vmem:[#allocation2 + $0x18] sm:$0xff] %vm128, %v87
    %133 = vst.msk [vmem:[#allocation2 + $0x20] sm:$0xff] %vm128, %v89
    %134 = vst.msk [vmem:[#allocation2 + $0x28] sm:$0xff] %vm128, %v91
    %135 = vst.msk [vmem:[#allocation2 + $0x30] sm:$0xff] %vm128, %v93
    %136 = vst.msk [vmem:[#allocation2 + $0x38] sm:$0xff] %vm128, %v95
    %137 = vst.msk [vmem:[#allocation2 + $0x40] sm:$0xff] %vm128, %v97
    %138 = vst.msk [vmem:[#allocation2 + $0x48] sm:$0xff] %vm128, %v99
    %139 = vst.msk [vmem:[#allocation2 + $0x50] sm:$0xff] %vm128, %v101
    %140 = vst.msk [vmem:[#allocation2 + $0x58] sm:$0xff] %vm128, %v103
    %141 = vst.msk [vmem:[#allocation2 + $0x60] sm:$0xff] %vm128, %v105
    %142 = vst.msk [vmem:[#allocation2 + $0x68] sm:$0xff] %vm128, %v107
    %143 = vst.msk [vmem:[#allocation2 + $0x70] sm:$0xff] %vm128, %v109
    %144 = vst.msk [vmem:[#allocation2 + $0x78] sm:$0xff] %vm128, %v111
    %v145 = vld [vmem:[#allocation2] sm:$0xff]
    %v146 = vld [vmem:[#allocation2 + $0x8] sm:$0xff]
    %v147 = vld [vmem:[#allocation2 + $0x10] sm:$0xff]
    %v148 = vld [vmem:[#allocation2 + $0x18] sm:$0xff]
    %v149 = vld [vmem:[#allocation2 + $0x20] sm:$0xff]
    %v150 = vld [vmem:[#allocation2 + $0x28] sm:$0xff]
    %v151 = vld [vmem:[#allocation2 + $0x30] sm:$0xff]
    %v152 = vld [vmem:[#allocation2 + $0x38] sm:$0xff]
    %v153 = vld [vmem:[#allocation2 + $0x40] sm:$0xff]
    %v154 = vld [vmem:[#allocation2 + $0x48] sm:$0xff]
    %v155 = vld [vmem:[#allocation2 + $0x50] sm:$0xff]
    %v156 = vld [vmem:[#allocation2 + $0x58] sm:$0xff]
    %v157 = vld [vmem:[#allocation2 + $0x60] sm:$0xff]
    %v158 = vld [vmem:[#allocation2 + $0x68] sm:$0xff]
    %v159 = vld [vmem:[#allocation2 + $0x70] sm:$0xff]
    %v160 = vld [vmem:[#allocation2 + $0x78] sm:$0xff]
    %v161 = vld [vmem:[%s2] sm:$0xff]
    %v162 = vld [vmem:[%s2 + $0x8] sm:$0xff]
    %v163 = vld [vmem:[%s2 + $0x10] sm:$0xff]
    %v164 = vld [vmem:[%s2 + $0x18] sm:$0xff]
    %v165 = vld [vmem:[%s2 + $0x20] sm:$0xff]
    %v166 = vld [vmem:[%s2 + $0x28] sm:$0xff]
    %v167 = vld [vmem:[%s2 + $0x30] sm:$0xff]
    %v168 = vld [vmem:[%s2 + $0x38] sm:$0xff]
    %v169 = vld [vmem:[%s2 + $0x40] sm:$0xf]
    %v170 = vperm.slane %v169, 0
    %vm171 = vcmask 261120
    %v173 = vsel %vm171, %v145, 0
    %v176 = vsel %vm171, %v146, 0
    %v179 = vsel %vm171, %v147, 0
    %v182 = vsel %vm171, %v148, 0
    %v185 = vsel %vm171, %v149, 0
    %v188 = vsel %vm171, %v150, 0
    %v191 = vsel %vm171, %v151, 0
    %v194 = vsel %vm171, %v152, 0
    %v197 = vsel %vm171, %v153, 0
    %v200 = vsel %vm171, %v154, 0
    %v203 = vsel %vm171, %v155, 0
    %v206 = vsel %vm171, %v156, 0
    %v209 = vsel %vm171, %v157, 0
    %v212 = vsel %vm171, %v158, 0
    %v215 = vsel %vm171, %v159, 0
    %v218 = vsel %vm171, %v160, 0
    %220 = vmatpush.msra.mxu0 0.0
    %221 = vmatpush.msra.mxu0 0.0
    %222 = vmatpush.msra.mxu0 0.0
    %223 = vmatpush.msra.mxu0 0.0
    %224 = vmatpush.msra.mxu0 0.0
    %225 = vmatpush.msra.mxu0 0.0
    %226 = vmatpush.msra.mxu0 0.0
    %227 = vmatpush.msra.mxu0 0.0
    %228 = vmatpush.msra.mxu0 0.0
    %229 = vmatpush.msra.mxu0 0.0
    %230 = vmatpush.msra.mxu0 0.0
    %231 = vmatpush.msra.mxu0 0.0
    %232 = vmatpush.msra.mxu0 %v164
    %233 = vmatpush.msra.mxu0 %v163
    %234 = vmatpush.msra.mxu0 %v162
    %235 = vmatpush.msra.mxu0 %v161
    %236 = vmatmul.f32.gmra.mxu0 %v173
    %v237 = vpop.f32.mrf.mxu0
    %v238 = vadd.f32 %v170, %v237
    %239 = vmatmul.f32.gmra.mxu0 %v176
    %v240 = vpop.f32.mrf.mxu0
    %v241 = vadd.f32 %v170, %v240
    %242 = vmatmul.f32.gmra.mxu0 %v179
    %v243 = vpop.f32.mrf.mxu0
    %v244 = vadd.f32 %v170, %v243
    %245 = vmatmul.f32.gmra.mxu0 %v182
    %v246 = vpop.f32.mrf.mxu0
    %v247 = vadd.f32 %v170, %v246
    %248 = vmatmul.f32.gmra.mxu0 %v185
    %v249 = vpop.f32.mrf.mxu0
    %v250 = vadd.f32 %v170, %v249
    %251 = vmatmul.f32.gmra.mxu0 %v188
    %v252 = vpop.f32.mrf.mxu0
    %v253 = vadd.f32 %v170, %v252
    %254 = vmatmul.f32.gmra.mxu0 %v191
    %v255 = vpop.f32.mrf.mxu0
    %v256 = vadd.f32 %v170, %v255
    %257 = vmatmul.f32.gmra.mxu0 %v194
    %v258 = vpop.f32.mrf.mxu0
    %v259 = vadd.f32 %v170, %v258
    %260 = vmatmul.f32.gmra.mxu0 %v197
    %v261 = vpop.f32.mrf.mxu0
    %v262 = vadd.f32 %v170, %v261
    %263 = vmatmul.f32.gmra.mxu0 %v200
    %v264 = vpop.f32.mrf.mxu0
    %v265 = vadd.f32 %v170, %v264
    %266 = vmatmul.f32.gmra.mxu0 %v203
    %v267 = vpop.f32.mrf.mxu0
    %v268 = vadd.f32 %v170, %v267
    %269 = vmatmul.f32.gmra.mxu0 %v206
    %v270 = vpop.f32.mrf.mxu0
    %v271 = vadd.f32 %v170, %v270
    %272 = vmatmul.f32.gmra.mxu0 %v209
    %v273 = vpop.f32.mrf.mxu0
    %v274 = vadd.f32 %v170, %v273
    %275 = vmatmul.f32.gmra.mxu0 %v212
    %v276 = vpop.f32.mrf.mxu0
    %v277 = vadd.f32 %v170, %v276
    %278 = vmatmul.f32.gmra.mxu0 %v215
    %v279 = vpop.f32.mrf.mxu0
    %v280 = vadd.f32 %v170, %v279
    %281 = vmatmul.f32.gmra.mxu0 %v218
    %v282 = vpop.f32.mrf.mxu0
    %v283 = vadd.f32 %v170, %v282
    %284 = vdwg.mxu0
    %v285 = vtanh.pop %v238
    %v286 = vtanh.pop %v241
    %v287 = vtanh.pop %v244
    %v288 = vtanh.pop %v247
    %v289 = vtanh.pop %v250
    %v290 = vtanh.pop %v253
    %v291 = vtanh.pop %v256
    %v292 = vtanh.pop %v259
    %v293 = vtanh.pop %v262
    %v294 = vtanh.pop %v265
    %v295 = vtanh.pop %v268
    %v296 = vtanh.pop %v271
    %v297 = vtanh.pop %v274
    %v298 = vtanh.pop %v277
    %v299 = vtanh.pop %v280
    %v300 = vtanh.pop %v283
    %v301 = vperm.slane %v169, 1
    %v303 = vsel %vm171, %v285, 0
    %v306 = vsel %vm171, %v286, 0
    %v309 = vsel %vm171, %v287, 0
    %v312 = vsel %vm171, %v288, 0
    %v315 = vsel %vm171, %v289, 0
    %v318 = vsel %vm171, %v290, 0
    %v321 = vsel %vm171, %v291, 0
    %v324 = vsel %vm171, %v292, 0
    %v327 = vsel %vm171, %v293, 0
    %v330 = vsel %vm171, %v294, 0
    %v333 = vsel %vm171, %v295, 0
    %v336 = vsel %vm171, %v296, 0
    %v339 = vsel %vm171, %v297, 0
    %v342 = vsel %vm171, %v298, 0
    %v345 = vsel %vm171, %v299, 0
    %v348 = vsel %vm171, %v300, 0
    %350 = vmatpush.msra.mxu0 0.0
    %351 = vmatpush.msra.mxu0 0.0
    %352 = vmatpush.msra.mxu0 0.0
    %353 = vmatpush.msra.mxu0 0.0
    %354 = vmatpush.msra.mxu0 0.0
    %355 = vmatpush.msra.mxu0 0.0
    %356 = vmatpush.msra.mxu0 0.0
    %357 = vmatpush.msra.mxu0 0.0
    %358 = vmatpush.msra.mxu0 0.0
    %359 = vmatpush.msra.mxu0 0.0
    %360 = vmatpush.msra.mxu0 0.0
    %361 = vmatpush.msra.mxu0 0.0
    %362 = vmatpush.msra.mxu0 %v168
    %363 = vmatpush.msra.mxu0 %v167
    %364 = vmatpush.msra.mxu0 %v166
    %365 = vmatpush.msra.mxu0 %v165
    %366 = vmatmul.f32.gmra.mxu0 %v303
    %v367 = vpop.f32.mrf.mxu0
    %v368 = vadd.f32 %v301, %v367
    %369 = vmatmul.f32.gmra.mxu0 %v306
    %v370 = vpop.f32.mrf.mxu0
    %v371 = vadd.f32 %v301, %v370
    %372 = vmatmul.f32.gmra.mxu0 %v309
    %v373 = vpop.f32.mrf.mxu0
    %v374 = vadd.f32 %v301, %v373
    %375 = vmatmul.f32.gmra.mxu0 %v312
    %v376 = vpop.f32.mrf.mxu0
    %v377 = vadd.f32 %v301, %v376
    %378 = vmatmul.f32.gmra.mxu0 %v315
    %v379 = vpop.f32.mrf.mxu0
    %v380 = vadd.f32 %v301, %v379
    %381 = vmatmul.f32.gmra.mxu0 %v318
    %v382 = vpop.f32.mrf.mxu0
    %v383 = vadd.f32 %v301, %v382
    %384 = vmatmul.f32.gmra.mxu0 %v321
    %v385 = vpop.f32.mrf.mxu0
    %v386 = vadd.f32 %v301, %v385
    %387 = vmatmul.f32.gmra.mxu0 %v324
    %v388 = vpop.f32.mrf.mxu0
    %v389 = vadd.f32 %v301, %v388
    %390 = vmatmul.f32.gmra.mxu0 %v327
    %v391 = vpop.f32.mrf.mxu0
    %v392 = vadd.f32 %v301, %v391
    %393 = vmatmul.f32.gmra.mxu0 %v330
    %v394 = vpop.f32.mrf.mxu0
    %v395 = vadd.f32 %v301, %v394
    %396 = vmatmul.f32.gmra.mxu0 %v333
    %v397 = vpop.f32.mrf.mxu0
    %v398 = vadd.f32 %v301, %v397
    %399 = vmatmul.f32.gmra.mxu0 %v336
    %v400 = vpop.f32.mrf.mxu0
    %v401 = vadd.f32 %v301, %v400
    %402 = vmatmul.f32.gmra.mxu0 %v339
    %v403 = vpop.f32.mrf.mxu0
    %v404 = vadd.f32 %v301, %v403
    %405 = vmatmul.f32.gmra.mxu0 %v342
    %v406 = vpop.f32.mrf.mxu0
    %v407 = vadd.f32 %v301, %v406
    %408 = vmatmul.f32.gmra.mxu0 %v345
    %v409 = vpop.f32.mrf.mxu0
    %v410 = vadd.f32 %v301, %v409
    %411 = vmatmul.f32.gmra.mxu0 %v348
    %v412 = vpop.f32.mrf.mxu0
    %v413 = vadd.f32 %v301, %v412
    %414 = vdwg.mxu0
    %v415 = vtanh.pop %v368
    %v416 = vtanh.pop %v371
    %v417 = vtanh.pop %v374
    %v418 = vtanh.pop %v377
    %v419 = vtanh.pop %v380
    %v420 = vtanh.pop %v383
    %v421 = vtanh.pop %v386
    %v422 = vtanh.pop %v389
    %v423 = vtanh.pop %v392
    %v424 = vtanh.pop %v395
    %v425 = vtanh.pop %v398
    %v426 = vtanh.pop %v401
    %v427 = vtanh.pop %v404
    %v428 = vtanh.pop %v407
    %v429 = vtanh.pop %v410
    %v430 = vtanh.pop %v413
    %432 = vset.pattern.permute.xlu0 0
    %433 = vperm.xlu0 %432, %v169
    %v434 = vpop.permute.xlu0 %433
    %v435 = vrot.slane %v169, 3
    %v436 = vrot.slane %v434, 2
    %v438 = vsel %vm171, %v435, 0
    %v441 = vsel %vm171, %v415, 0
    %v444 = vsel %vm171, %v416, 0
    %v447 = vsel %vm171, %v417, 0
    %v450 = vsel %vm171, %v418, 0
    %v453 = vsel %vm171, %v419, 0
    %v456 = vsel %vm171, %v420, 0
    %v459 = vsel %vm171, %v421, 0
    %v462 = vsel %vm171, %v422, 0
    %v465 = vsel %vm171, %v423, 0
    %v468 = vsel %vm171, %v424, 0
    %v471 = vsel %vm171, %v425, 0
    %v474 = vsel %vm171, %v426, 0
    %v477 = vsel %vm171, %v427, 0
    %v480 = vsel %vm171, %v428, 0
    %v483 = vsel %vm171, %v429, 0
    %v486 = vsel %vm171, %v430, 0
    %488 = vmatpush.xpose.msra.mxu0 %v486
    %489 = vmatpush.xpose.msra.mxu0 %v483
    %490 = vmatpush.xpose.msra.mxu0 %v480
    %491 = vmatpush.xpose.msra.mxu0 %v477
    %492 = vmatpush.xpose.msra.mxu0 %v474
    %493 = vmatpush.xpose.msra.mxu0 %v471
    %494 = vmatpush.xpose.msra.mxu0 %v468
    %495 = vmatpush.xpose.msra.mxu0 %v465
    %496 = vmatpush.xpose.msra.mxu0 %v462
    %497 = vmatpush.xpose.msra.mxu0 %v459
    %498 = vmatpush.xpose.msra.mxu0 %v456
    %499 = vmatpush.xpose.msra.mxu0 %v453
    %500 = vmatpush.xpose.msra.mxu0 %v450
    %501 = vmatpush.xpose.msra.mxu0 %v447
    %502 = vmatpush.xpose.msra.mxu0 %v444
    %503 = vmatpush.xpose.msra.mxu0 %v441
    %504 = vmatmul.f32.gmra.mxu0 %v438
    %v505 = vpop.f32.mrf.mxu0
    %v506 = vadd.f32 %v436, %v505
    %507 = vdwg.mxu0
    %508 = vst [vmem:[#allocation3] sm:$0x1] %v506
    // Predicated region
    $region14: #{tpu_custom_call.1} parent=1 // pred_check
      _
    $region15: #{tpu_custom_call.1} parent=1 // pred_check_branch
      %510 = sbr.rel (0) target = $region17
    $region16: #{tpu_custom_call.1} parent=1 // pred_region
      %512 = vsyncadd [#allocation4], 0
      %s514 = sshll.u32 [#allocation3], 4
      %s515 = int_to_ptr.vmem [resolvable:$true] %s514
      %s516 = sshll.u32 %s3, 4
      %s517 = int_to_ptr.hbm [resolvable:$true] %s516
      %519 = dma.vmem_to_hbm [thread:$0]  %s515, 16, %s517, [#allocation4]
    $region17: #{tpu_custom_call.1} parent=1 // pred_fallthru
      _
    // Predicated region
    $region18: #{tpu_custom_call.1} parent=1 // pred_check
      _
    $region19: #{tpu_custom_call.1} parent=1 // pred_check_branch
      %521 = sbr.rel (0) target = $region21
    $region20: #{tpu_custom_call.1} parent=1 // pred_region
      %523 = dma.done [#allocation4], 16
    $region21: #{tpu_custom_call.1} parent=1 // pred_fallthru
      _
    %524 = vsyncpa [#allocation4], 1

</llo_original>
